<compile_context>
chip_gen: v7x
topology: tpu7x:2x2x1
jax: 0.10.0
libtpu: 0.0.40
codegen_flags: <defaults>
</compile_context>

<pallas_src>
import functools

import jax
import jax.numpy as jnp
from jax.experimental import pallas as pl
from jax.experimental.pallas import tpu as pltpu


# ---------------------------------------------------------------------------
# Kernels
# ---------------------------------------------------------------------------
def _affine_kernel(x_ref, a_ref, b_ref, y_ref):
    """y = x * a + b with (1, D) rows a, b broadcast over the batch tile."""
    x = x_ref[...].astype(jnp.float32)
    y_ref[...] = (x * a_ref[...] + b_ref[...]).astype(y_ref.dtype)


def _batch_stats_kernel(x_ref, sum_ref, sumsq_ref, *, n_total, tile_n):
    """Accumulate per-feature sum and sum-of-squares across batch tiles."""
    @pl.when(pl.program_id(0) == 0)
    def _():
        sum_ref[...] = jnp.zeros_like(sum_ref)
        sumsq_ref[...] = jnp.zeros_like(sumsq_ref)

    x = x_ref[...].astype(jnp.float32)
    # Mask rows of a ragged last tile so they do not pollute the reduction.
    row = pl.program_id(0) * tile_n + jax.lax.broadcasted_iota(
        jnp.int32, x.shape, 0)
    x = jnp.where(row < n_total, x, 0.0)
    sum_ref[...] += jnp.sum(x, axis=0, keepdims=True)
    sumsq_ref[...] += jnp.sum(x * x, axis=0, keepdims=True)


# ---------------------------------------------------------------------------
# Wrappers
# ---------------------------------------------------------------------------
def _pick_tile_n(n, d, itemsize=4, budget_bytes=2 << 20):
    """Row-tile sized so double-buffered in+out tiles stay well inside scoped
    VMEM on every generation (v5e 16 MiB .. v7x 32 MiB scoped defaults)."""
    t = max(8, (budget_bytes // max(1, d * itemsize)) // 8 * 8)
    t = min(t, 4096)
    if n <= t:
        return n          # full-extent block is always layout-legal
    return t              # multiple of 8; Pallas masks the ragged last tile


def _affine_apply(x, a, b):
    """Pallas-tiled y = x * a + b  (a, b are per-feature (D,) vectors)."""
    n, d = x.shape
    tile_n = _pick_tile_n(n, d)
    grid = (pl.cdiv(n, tile_n),)
    return pl.pallas_call(
        _affine_kernel,
        out_shape=jax.ShapeDtypeStruct((n, d), x.dtype),
        grid=grid,
        in_specs=[
            pl.BlockSpec((tile_n, d), lambda i: (i, 0)),
            pl.BlockSpec((1, d), lambda i: (0, 0)),   # resident across tiles
            pl.BlockSpec((1, d), lambda i: (0, 0)),   # resident across tiles
        ],
        out_specs=pl.BlockSpec((tile_n, d), lambda i: (i, 0)),
        compiler_params=pltpu.CompilerParams(
            dimension_semantics=("parallel",)),
    )(x,
      a.reshape(1, d).astype(jnp.float32),
      b.reshape(1, d).astype(jnp.float32))


def _batch_stats(x):
    """Per-feature batch mean and (biased) variance via accumulator grid."""
    n, d = x.shape
    tile_n = _pick_tile_n(n, d)
    grid = (pl.cdiv(n, tile_n),)
    s, sq = pl.pallas_call(
        functools.partial(_batch_stats_kernel, n_total=n, tile_n=tile_n),
        out_shape=(jax.ShapeDtypeStruct((1, d), jnp.float32),
                   jax.ShapeDtypeStruct((1, d), jnp.float32)),
        grid=grid,
        in_specs=[pl.BlockSpec((tile_n, d), lambda i: (i, 0))],
        out_specs=(pl.BlockSpec((1, d), lambda i: (0, 0)),
                   pl.BlockSpec((1, d), lambda i: (0, 0))),
        compiler_params=pltpu.CompilerParams(
            dimension_semantics=("arbitrary",)),
    )(x)
    mean = (s / n).reshape(d)
    var = (sq / n).reshape(d) - mean * mean   # E[x^2] - mean^2  (biased, /N)
    return mean, var


def bn_flow_forward(x, log_gamma, beta, running_mean, running_var, logpx=None,
                    *, reverse=False, training=False, momentum=0.9, eps=1e-5):
    """Functional mirror of BatchNormFlow.forward.

    Returns (y, new_logpx_or_None, new_running_mean, new_running_var).
    Running buffers are returned (not mutated in place).
    """
    new_rm, new_rv = running_mean, running_var
    if training and reverse:
        bmean, bvar = _batch_stats(x)
        bvar = bvar + eps
        new_rm = running_mean * momentum + bmean * (1.0 - momentum)
        new_rv = running_var * momentum + bvar * (1.0 - momentum)
        mean, var = bmean, bvar
    else:
        mean, var = running_mean, running_var

    if reverse:
        # y = exp(lg) * (x - mean) * rsqrt(var) + beta  ==  x * a + b
        a = jnp.exp(log_gamma) * jax.lax.rsqrt(var)
        b = beta - mean * a
        ldj = jnp.sum(log_gamma - 0.5 * jnp.log(var))
    else:
        # y = (x - beta) * exp(-lg) * sqrt(var) + mean  ==  x * a + b
        a = jnp.sqrt(var) * jnp.exp(-log_gamma)
        b = mean - beta * a
        ldj = -jnp.sum(log_gamma - 0.5 * jnp.log(var))

    y = _affine_apply(x, a, b)
    if logpx is None:
        return y, None, new_rm, new_rv
    return y, logpx + ldj, new_rm, new_rv


# ---------------------------------------------------------------------------
# Pure-JAX reference (mirrors the PyTorch forward exactly)
# ---------------------------------------------------------------------------
def bn_flow_ref(x, log_gamma, beta, mean, var, logpx, *, reverse):
    if reverse:
        x_hat = (x - mean) / jnp.sqrt(var)
        y = jnp.exp(log_gamma) * x_hat + beta
        ldj = jnp.sum(log_gamma - 0.5 * jnp.log(var), axis=-1)
    else:
        x_hat = (x - beta) / jnp.exp(log_gamma)
        y = x_hat * jnp.sqrt(var) + mean
        ldj = -jnp.sum(log_gamma - 0.5 * jnp.log(var), axis=-1)
    return y, logpx + ldj


if __name__ == "__main__":
    N, D = 8, 32          # batch=8, num_inputs=32
    eps = 1e-5
    momentum = 0.9

    key = jax.random.PRNGKey(0)
    kx, klp = jax.random.split(key)
    x = jax.random.normal(kx, (N, D), dtype=jnp.float32)
    logpx = jax.random.normal(klp, (N,), dtype=jnp.float32)

    # Deterministic parameter init, exactly as in __init__:
    log_gamma = jnp.zeros((D,), jnp.float32)
    beta = jnp.zeros((D,), jnp.float32)
    running_mean = jnp.zeros((D,), jnp.float32)
    running_var = jnp.ones((D,), jnp.float32)

    # ---- eval forward path (reverse=False, running stats) ----
    y, lp, _, _ = bn_flow_forward(x, log_gamma, beta, running_mean,
                                  running_var, logpx, reverse=False,
                                  training=False, momentum=momentum, eps=eps)
    jax.block_until_ready((y, lp))
    y_ref, lp_ref = bn_flow_ref(x, log_gamma, beta, running_mean, running_var,
                                logpx, reverse=False)
    assert jnp.allclose(y, y_ref, atol=1e-5, rtol=1e-5)
    assert jnp.allclose(lp, lp_ref, atol=1e-5, rtol=1e-5)

    # ---- eval reverse path (running stats) ----
    yr, lpr, _, _ = bn_flow_forward(x, log_gamma, beta, running_mean,
                                    running_var, logpx, reverse=True,
                                    training=False, momentum=momentum, eps=eps)
    jax.block_until_ready((yr, lpr))
    yr_ref, lpr_ref = bn_flow_ref(x, log_gamma, beta, running_mean, running_var,
                                  logpx, reverse=True)
    assert jnp.allclose(yr, yr_ref, atol=1e-5, rtol=1e-5)
    assert jnp.allclose(lpr, lpr_ref, atol=1e-5, rtol=1e-5)

    # ---- training + reverse path (batch stats computed by Pallas reduction) ----
    yt, lpt, new_rm, new_rv = bn_flow_forward(
        x, log_gamma, beta, running_mean, running_var, logpx,
        reverse=True, training=True, momentum=momentum, eps=eps)
    jax.block_until_ready((yt, lpt, new_rm, new_rv))
    bmean = x.mean(0)
    bvar = ((x - bmean) ** 2).mean(0) + eps
    yt_ref, lpt_ref = bn_flow_ref(x, log_gamma, beta, bmean, bvar,
                                  logpx, reverse=True)
    assert jnp.allclose(yt, yt_ref, atol=1e-5, rtol=1e-5)
    assert jnp.allclose(lpt, lpt_ref, atol=1e-5, rtol=1e-5)
    assert jnp.allclose(new_rm, running_mean * momentum + bmean * (1 - momentum),
                        atol=1e-6)
    assert jnp.allclose(new_rv, running_var * momentum + bvar * (1 - momentum),
                        atol=1e-5)

    # ---- logpx=None path returns y only ----
    y_only, lp_none, _, _ = bn_flow_forward(x, log_gamma, beta, running_mean,
                                            running_var, None, reverse=False)
    jax.block_until_ready(y_only)
    assert lp_none is None
    assert jnp.allclose(y_only, y_ref, atol=1e-5, rtol=1e-5)

    print("KERNEL_OK")
</pallas_src>

<mosaic_0001>
module attributes {stable_mosaic.version = 11 : i64} {
  func.func @_affine_kernel(%arg0: i32, %arg1: memref<8x32xf32, #tpu.memory_space<vmem>>, %arg2: memref<1x32xf32, #tpu.memory_space<vmem>>, %arg3: memref<1x32xf32, #tpu.memory_space<vmem>>, %arg4: memref<8x32xf32, #tpu.memory_space<vmem>>) attributes {dimension_semantics = [#tpu.dimension_semantics<parallel>], iteration_bounds = array<i64: 1>, scalar_prefetch = 0 : i64, scratch_operands = 0 : i64, tpu.core_type = #tpu.core_type<tc>, window_params = [{transform_indices = @transform_0, window_bounds = array<i64: 8, 32>}, {pipeline_mode = #tpu.pipeline_mode<synchronous>, transform_indices = @transform_1, window_bounds = array<i64: 1, 32>}, {pipeline_mode = #tpu.pipeline_mode<synchronous>, transform_indices = @transform_2, window_bounds = array<i64: 1, 32>}, {transform_indices = @transform_3, window_bounds = array<i64: 8, 32>}]} {
    %c0 = arith.constant 0 : index
    %c0_0 = arith.constant 0 : index
    %0 = vector.load %arg1[%c0, %c0_0] : memref<8x32xf32, #tpu.memory_space<vmem>>, vector<8x32xf32>
    %c0_1 = arith.constant 0 : index
    %c0_2 = arith.constant 0 : index
    %1 = vector.load %arg2[%c0_1, %c0_2] : memref<1x32xf32, #tpu.memory_space<vmem>>, vector<1x32xf32>
    %2 = vector.broadcast %1 : vector<1x32xf32> to vector<8x32xf32>
    %3 = arith.mulf %0, %2 : vector<8x32xf32>
    %c0_3 = arith.constant 0 : index
    %c0_4 = arith.constant 0 : index
    %4 = vector.load %arg3[%c0_3, %c0_4] : memref<1x32xf32, #tpu.memory_space<vmem>>, vector<1x32xf32>
    %5 = vector.broadcast %4 : vector<1x32xf32> to vector<8x32xf32>
    %6 = arith.addf %3, %5 : vector<8x32xf32>
    %c0_5 = arith.constant 0 : index
    %c0_6 = arith.constant 0 : index
    %7 = vector.load %arg4[%c0_5, %c0_6] : memref<8x32xf32, #tpu.memory_space<vmem>>, vector<8x32xf32>
    tpu.vector_store %arg4[%c0_5, %c0_6], %6 {strides = array<i32>} : memref<8x32xf32, #tpu.memory_space<vmem>>, vector<8x32xf32>,
    return
  }
  func.func @transform_0(%arg0: i32) -> (i32, i32) {
    %c0_i32 = arith.constant 0 : i32
    %c0_i32_0 = arith.constant 0 : i32
    return %arg0, %c0_i32 : i32, i32
  }
  func.func @transform_1(%arg0: i32) -> (i32, i32) {
    %c0_i32 = arith.constant 0 : i32
    %c0_i32_0 = arith.constant 0 : i32
    %c0_i32_1 = arith.constant 0 : i32
    return %c0_i32, %c0_i32_0 : i32, i32
  }
  func.func @transform_2(%arg0: i32) -> (i32, i32) {
    %c0_i32 = arith.constant 0 : i32
    %c0_i32_0 = arith.constant 0 : i32
    %c0_i32_1 = arith.constant 0 : i32
    return %c0_i32, %c0_i32_0 : i32, i32
  }
  func.func @transform_3(%arg0: i32) -> (i32, i32) {
    %c0_i32 = arith.constant 0 : i32
    %c0_i32_0 = arith.constant 0 : i32
    return %arg0, %c0_i32 : i32, i32
  }
}

</mosaic_0001>

<llo_original>
// kernel: tpu_custom_call.1
$region0: #{tpu_custom_call.1}
  #allocation0 [shape = 'u32[]', space=smem, size = 0x4, offset = 0x4, fixed_abs, tag = 'smem constant byte address 0x4 - core index']
  #allocation1 [shape = 'u32[144,128]{1,0:T(1,128)}', space=vmem, size = 0x12000, scoped, tag = 'internal scratch']
  %s0 = inlined_call_operand.hbm [shape: f32[8,32], index: 0, kind: input, shape index: {}]
  %s1 = inlined_call_operand.vmem [shape: f32[1,32], index: 1, kind: input, shape index: {}]
  %s2 = inlined_call_operand.vmem [shape: f32[1,32], index: 2, kind: input, shape index: {}]
  %s3 = inlined_call_operand.hbm [shape: f32[8,32], index: 3, kind: output, shape index: {}]
  %s4 = sld [smem:[#allocation0]]
  $region26: #{tpu_custom_call.1} parent=0
    _
  %s6 = ssub.s32 1, %s4
  %s7 = scalar_select 0, %s6, %s4
  $region1: #{tpu_custom_call.1} parent=0
    #allocation2 [shape = 'u8[4096]{0}', space=vmem, size = 0x1000, scoped, tag = 'input window, operand 0, single buffered']
    #allocation3 [shape = 's32[1]{0}', space=sflag, size = 0x4, scoped, tag = 'scoped memory for tpu_custom_call.1']
    #allocation4 [shape = 's32[1]{0}', space=sflag, size = 0x4, scoped, tag = 'scoped memory for tpu_custom_call.1']
    #allocation5 [shape = 'u8[4096]{0}', space=vmem, size = 0x1000, scoped, tag = 'output window, operand 0, single buffered']
    %8 = vsyncpa [#allocation3], 0
    %9 = vsyncpa [#allocation4], 0
    // Predicated region
    $region2: #{tpu_custom_call.1} parent=1 // pred_check
      _
    $region3: #{tpu_custom_call.1} parent=1 // pred_check_branch
      %11 = sbr.rel (0) target = $region5
    $region4: #{tpu_custom_call.1} parent=1 // pred_region
      %s13 = ssub.s32 128, 128
      %14 = vsyncadd [#allocation3], %s13
      %s16 = sshll.u32 [#allocation2], 4
      %s17 = int_to_ptr.vmem [resolvable:$true] %s16
      %19 = dma.hbm_to_vmem [thread:$0]  %s0, 128, %s17, [#allocation3]
    $region5: #{tpu_custom_call.1} parent=1 // pred_fallthru
      _
    // Predicated region
    $region6: #{tpu_custom_call.1} parent=1 // pred_check
      _
    $region7: #{tpu_custom_call.1} parent=1 // pred_check_branch
      %21 = sbr.rel (0) target = $region9
    $region8: #{tpu_custom_call.1} parent=1 // pred_region
      _
    $region9: #{tpu_custom_call.1} parent=1 // pred_fallthru
      _
    // Predicated region
    $region10: #{tpu_custom_call.1} parent=1 // pred_check
      _
    $region11: #{tpu_custom_call.1} parent=1 // pred_check_branch
      %23 = sbr.rel (0) target = $region13
    $region12: #{tpu_custom_call.1} parent=1 // pred_region
      _
    $region13: #{tpu_custom_call.1} parent=1 // pred_fallthru
      _
    // Predicated region
    $region14: #{tpu_custom_call.1} parent=1 // pred_check
      _
    $region15: #{tpu_custom_call.1} parent=1 // pred_check_branch
      %25 = sbr.rel (0) target = $region17
    $region16: #{tpu_custom_call.1} parent=1 // pred_region
      %26 = dma.done [#allocation3], 128
    $region17: #{tpu_custom_call.1} parent=1 // pred_fallthru
      _
    %v27 = vld [vmem:[#allocation2] sm:$0xff]
    %v28 = vld [vmem:[%s1] sm:$0x1]
    %v30 = vlaneseq
    %v31 = vshrl.u32 %v30, 7
    %v32 = vsub.s32 0, %v31
    %v33 = vrot.slane %v28, %v32
    %v35 = vmul.f32 %v27, %v33
    %v36 = vld [vmem:[%s2] sm:$0x1]
    %v38 = vlaneseq
    %v39 = vshrl.u32 %v38, 7
    %v40 = vsub.s32 0, %v39
    %v41 = vrot.slane %v36, %v40
    %v43 = vadd.f32 %v35, %v41
    %vm44 = vcmask 261120
    %45 = vst.msk [vmem:[#allocation5] sm:$0xff] %vm44, %v43
    // Predicated region
    $region18: #{tpu_custom_call.1} parent=1 // pred_check
      _
    $region19: #{tpu_custom_call.1} parent=1 // pred_check_branch
      %47 = sbr.rel (0) target = $region21
    $region20: #{tpu_custom_call.1} parent=1 // pred_region
      %s49 = ssub.s32 128, 128
      %50 = vsyncadd [#allocation4], %s49
      %s52 = sshll.u32 [#allocation5], 4
      %s53 = int_to_ptr.vmem [resolvable:$true] %s52
      %55 = dma.vmem_to_hbm [thread:$0]  %s53, 128, %s3, [#allocation4]
    $region21: #{tpu_custom_call.1} parent=1 // pred_fallthru
      _
    // Predicated region
    $region22: #{tpu_custom_call.1} parent=1 // pred_check
      _
    $region23: #{tpu_custom_call.1} parent=1 // pred_check_branch
      %57 = sbr.rel (0) target = $region25
    $region24: #{tpu_custom_call.1} parent=1 // pred_region
      %58 = dma.done [#allocation4], 128
    $region25: #{tpu_custom_call.1} parent=1 // pred_fallthru
      _
    %59 = vsyncpa [#allocation3], 1
    %60 = vsyncpa [#allocation4], 1

</llo_original>
